<compile_context>
chip_gen: v6e
topology: v6e:2x2x1
jax: 0.10.0
libtpu: 0.0.40
codegen_flags: <defaults>
</compile_context>

<pallas_src>
import math

import jax
import jax.numpy as jnp
from jax import lax
from jax.experimental import pallas as pl
from jax.experimental.pallas import tpu as pltpu


def _round_up(a: int, m: int) -> int:
    return ((a + m - 1) // m) * m


def vae_forward_kernel(x_ref, w1_ref, dec_ref, z_ref):
    """One row-tile of the fused encode+decode.

    x_ref:   [TM, Dp]  input rows (padded feature dim)
    w1_ref:  [Gp, Dp]  map1 weight, VMEM-resident across the whole grid
    dec_ref: [TM, Dp]  decoded output
    z_ref:   [TM, Gp]  latent output
    """
    x = x_ref[...]
    w1 = w1_ref[...]

    # encode: z = x @ W1^T, contracting the D axis of both operands directly
    # (avoids materializing a transposed copy of W1 each grid step).
    z = lax.dot_general(
        x, w1,
        dimension_numbers=(((1,), (1,)), ((), ())),
        preferred_element_type=jnp.float32,
    )

    # Store z first so the writeback can overlap with the decode matmul
    # (keeps the single vst slot on v5e from serializing the epilogue).
    z_ref[...] = z.astype(z_ref.dtype)

    # decode: decoded = z @ W1 (tied weights, native [G, D] orientation).
    dec = lax.dot_general(
        z.astype(w1.dtype), w1,
        dimension_numbers=(((1,), (0,)), ((), ())),
        preferred_element_type=jnp.float32,
    )
    dec_ref[...] = dec.astype(dec_ref.dtype)


def vae_forward(x, w1, *, compute_dtype=jnp.float32, block_rows=512):
    """Flatten leading dims to rows, pad to TPU-friendly shapes, run the kernel.

    x:  [..., emb_dim]
    w1: [g_size, emb_dim]   (PyTorch nn.Linear layout: [out_features, in_features])
    returns (decoded [..., emb_dim], z [..., g_size])  in float32.
    """
    *lead, d = x.shape
    g, d_w = w1.shape
    assert d == d_w, "emb_dim mismatch"
    n = math.prod(lead) if lead else 1

    # --- pad to lane-dense / sublane-aligned shapes -------------------------
    dp = _round_up(d, 128)                       # lane-dense dec / contraction dim
    gp = _round_up(g, 128)                       # lane-dense z
    tm = min(_round_up(block_rows, 8), _round_up(n, 8))
    n_pad = _round_up(n, tm)
    num_tiles = n_pad // tm

    x2d = x.reshape(n, d).astype(compute_dtype)
    w1c = w1.astype(compute_dtype)
    x_p = jnp.zeros((n_pad, dp), compute_dtype).at[:n, :d].set(x2d)
    w1_p = jnp.zeros((gp, dp), compute_dtype).at[:g, :d].set(w1c)

    # --- VMEM budget (double-buffered tiles) and cost estimate --------------
    in_item = jnp.dtype(compute_dtype).itemsize
    vmem_bytes = 2 * (tm * dp * in_item        # x tile
                      + gp * dp * in_item      # weight (resident)
                      + tm * dp * 4            # dec tile (f32 out)
                      + tm * gp * 4)           # z tile  (f32 out)
    vmem_limit = min(max(2 * vmem_bytes, 16 << 20), 100 << 20)

    cost = pl.CostEstimate(
        flops=4 * n * d * g,                   # encode + decode matmuls
        transcendentals=0,
        bytes_accessed=(n_pad * dp * in_item + gp * dp * in_item
                        + n_pad * dp * 4 + n_pad * gp * 4),
    )

    dec2d, z2d = pl.pallas_call(
        vae_forward_kernel,
        out_shape=(
            jax.ShapeDtypeStruct((n_pad, dp), jnp.float32),  # decoded
            jax.ShapeDtypeStruct((n_pad, gp), jnp.float32),  # z
        ),
        grid_spec=pltpu.PrefetchScalarGridSpec(
            num_scalar_prefetch=0,
            grid=(num_tiles,),
            in_specs=[
                pl.BlockSpec((tm, dp), lambda i: (i, 0)),   # x row tile
                pl.BlockSpec((gp, dp), lambda i: (0, 0)),   # W1 stays resident
            ],
            out_specs=(
                pl.BlockSpec((tm, dp), lambda i: (i, 0)),   # decoded
                pl.BlockSpec((tm, gp), lambda i: (i, 0)),   # z
            ),
        ),
        compiler_params=pltpu.CompilerParams(
            dimension_semantics=("parallel",),              # shard rows across TCs
            vmem_limit_bytes=int(vmem_limit),
        ),
        cost_estimate=cost,
    )(x_p, w1_p)

    decoded = dec2d[:n, :d].reshape(*lead, d)
    z = z2d[:n, :g].reshape(*lead, g)
    return decoded, z


def reference_forward(x, w1):
    """Pure-JAX reference matching the PyTorch module."""
    z = jnp.einsum("...d,gd->...g", x, w1)       # map1(x)
    dec = jnp.einsum("...g,gd->...d", z, w1)     # F.linear(z, W1.t())
    return dec, z


if __name__ == "__main__":
    # Small shapes consistent with the module:
    #   params.g_input_size (emb_dim) = 32, params.g_size = 32
    # (encode() applies map2 to x as well, which requires g_size == emb_dim.)
    batch, seq = 2, 8
    emb_dim, g_size = 32, 32

    key = jax.random.PRNGKey(0)
    kx, kw1 = jax.random.split(key)

    x = jax.random.normal(kx, (batch, seq, emb_dim), dtype=jnp.float32)
    bound = 1.0 / (emb_dim ** 0.5)
    w1 = jax.random.uniform(
        kw1, (g_size, emb_dim), dtype=jnp.float32, minval=-bound, maxval=bound
    )

    dec_ref, z_ref = reference_forward(x, w1)

    # f32 path: exact match to the reference.
    decoded, z = vae_forward(x, w1, compute_dtype=jnp.float32)
    decoded = jax.block_until_ready(decoded)
    z = jax.block_until_ready(z)
    assert decoded.shape == (batch, seq, emb_dim)
    assert z.shape == (batch, seq, g_size)
    assert jnp.allclose(decoded, dec_ref, atol=1e-5, rtol=1e-5)
    assert jnp.allclose(z, z_ref, atol=1e-5, rtol=1e-5)

    # bf16 MXU path (f32 accumulation / f32 outputs): looser tolerance.
    dec_bf16, z_bf16 = vae_forward(x, w1, compute_dtype=jnp.bfloat16)
    dec_bf16 = jax.block_until_ready(dec_bf16)
    z_bf16 = jax.block_until_ready(z_bf16)
    assert jnp.allclose(dec_bf16, dec_ref, atol=5e-2, rtol=5e-2)
    assert jnp.allclose(z_bf16, z_ref, atol=5e-2, rtol=5e-2)

    print("KERNEL_OK")
</pallas_src>

<mosaic_0001>
module attributes {stable_mosaic.version = 11 : i64} {
  func.func @vae_forward_kernel(%arg0: i32, %arg1: memref<16x128xf32, #tpu.memory_space<vmem>>, %arg2: memref<128x128xf32, #tpu.memory_space<vmem>>, %arg3: memref<16x128xf32, #tpu.memory_space<vmem>>, %arg4: memref<16x128xf32, #tpu.memory_space<vmem>>) attributes {dimension_semantics = [#tpu.dimension_semantics<parallel>], iteration_bounds = array<i64: 1>, scalar_prefetch = 0 : i64, scratch_operands = 0 : i64, tpu.core_type = #tpu.core_type<tc>, window_params = [{transform_indices = @transform_0, window_bounds = array<i64: 16, 128>}, {pipeline_mode = #tpu.pipeline_mode<synchronous>, transform_indices = @transform_1, window_bounds = array<i64: 128, 128>}, {transform_indices = @transform_2, window_bounds = array<i64: 16, 128>}, {transform_indices = @transform_3, window_bounds = array<i64: 16, 128>}]} {
    %c0 = arith.constant 0 : index
    %c0_0 = arith.constant 0 : index
    %0 = vector.load %arg1[%c0, %c0_0] : memref<16x128xf32, #tpu.memory_space<vmem>>, vector<16x128xf32>
    %c0_1 = arith.constant 0 : index
    %c0_2 = arith.constant 0 : index
    %1 = vector.load %arg2[%c0_1, %c0_2] : memref<128x128xf32, #tpu.memory_space<vmem>>, vector<128x128xf32>
    %cst = arith.constant dense<0.000000e+00> : vector<16x128xf32>
    %2 = tpu.matmul %0, %1, %cst {dimension_numbers = #tpu.dot_dimension_numbers<[1], [1], [0], [0], [0, 0, 1, 0], [], []>} : vector<16x128xf32>, vector<128x128xf32>, vector<16x128xf32> -> vector<16x128xf32>
    %c0_3 = arith.constant 0 : index
    %c0_4 = arith.constant 0 : index
    %3 = vector.load %arg4[%c0_3, %c0_4] : memref<16x128xf32, #tpu.memory_space<vmem>>, vector<16x128xf32>
    tpu.vector_store %arg4[%c0_3, %c0_4], %2 {strides = array<i32>} : memref<16x128xf32, #tpu.memory_space<vmem>>, vector<16x128xf32>,
    %cst_5 = arith.constant dense<0.000000e+00> : vector<16x128xf32>
    %4 = tpu.matmul %2, %1, %cst_5 {dimension_numbers = #tpu.dot_dimension_numbers<[1], [0], [0], [1], [0, 0, 1, 1], [], []>} : vector<16x128xf32>, vector<128x128xf32>, vector<16x128xf32> -> vector<16x128xf32>
    %c0_6 = arith.constant 0 : index
    %c0_7 = arith.constant 0 : index
    %5 = vector.load %arg3[%c0_6, %c0_7] : memref<16x128xf32, #tpu.memory_space<vmem>>, vector<16x128xf32>
    tpu.vector_store %arg3[%c0_6, %c0_7], %4 {strides = array<i32>} : memref<16x128xf32, #tpu.memory_space<vmem>>, vector<16x128xf32>,
    return
  }
  func.func @transform_0(%arg0: i32) -> (i32, i32) {
    %c0_i32 = arith.constant 0 : i32
    %c0_i32_0 = arith.constant 0 : i32
    return %arg0, %c0_i32 : i32, i32
  }
  func.func @transform_1(%arg0: i32) -> (i32, i32) {
    %c0_i32 = arith.constant 0 : i32
    %c0_i32_0 = arith.constant 0 : i32
    %c0_i32_1 = arith.constant 0 : i32
    return %c0_i32, %c0_i32_0 : i32, i32
  }
  func.func @transform_2(%arg0: i32) -> (i32, i32) {
    %c0_i32 = arith.constant 0 : i32
    %c0_i32_0 = arith.constant 0 : i32
    return %arg0, %c0_i32 : i32, i32
  }
  func.func @transform_3(%arg0: i32) -> (i32, i32) {
    %c0_i32 = arith.constant 0 : i32
    %c0_i32_0 = arith.constant 0 : i32
    return %arg0, %c0_i32 : i32, i32
  }
}

</mosaic_0001>

<llo_original>
// kernel: tpu_custom_call.1
$region0: #{tpu_custom_call.1}
  #allocation0 [shape = 'u32[]', space=smem, size = 0x4, offset = 0x4, fixed_abs, tag = 'smem constant byte address 0x4 - core index']
  #allocation1 [shape = 'u32[144,128]{1,0:T(1,128)}', space=vmem, size = 0x12000, scoped, tag = 'internal scratch']
  %s0 = inlined_call_operand.hbm [shape: f32[16,128], index: 0, kind: input, shape index: {}]
  %s1 = inlined_call_operand.hbm [shape: f32[128,128], index: 1, kind: input, shape index: {}]
  %s2 = inlined_call_operand.hbm [shape: f32[16,128], index: 2, kind: output, shape index: {0}]
  %s3 = inlined_call_operand.hbm [shape: f32[16,128], index: 3, kind: output, shape index: {1}]
  %4 = xla_tuple %s2, %s3
  %s5 = sld [smem:[#allocation0]]
  $region34: #{tpu_custom_call.1} parent=0
    _
  %s7 = ssub.s32 1, %s5
  %s8 = scalar_select 0, %s7, %s5
  $region1: #{tpu_custom_call.1} parent=0
    #allocation2 [shape = 'u8[8192]{0}', space=vmem, size = 0x2000, scoped, tag = 'input window, operand 0, single buffered']
    #allocation3 [shape = 's32[1]{0}', space=sflag, size = 0x4, scoped, tag = 'scoped memory for tpu_custom_call.1']
    #allocation4 [shape = 's32[1]{0}', space=sflag, size = 0x4, scoped, tag = 'scoped memory for tpu_custom_call.1']
    #allocation5 [shape = 'u8[65536]{0}', space=vmem, size = 0x10000, scoped, tag = 'input window, operand 1, single buffered']
    #allocation6 [shape = 's32[1]{0}', space=sflag, size = 0x4, scoped, tag = 'scoped memory for tpu_custom_call.1']
    #allocation7 [shape = 'u8[8192]{0}', space=vmem, size = 0x2000, scoped, tag = 'output window, operand 0, single buffered']
    #allocation8 [shape = 'u8[8192]{0}', space=vmem, size = 0x2000, scoped, tag = 'output window, operand 1, single buffered']
    #allocation9 [shape = 's32[1]{0}', space=sflag, size = 0x4, scoped, tag = 'scoped memory for tpu_custom_call.1']
    %9 = vsyncpa [#allocation3], 0
    %10 = vsyncpa [#allocation6], 0
    %11 = vsyncpa [#allocation4], 0
    %12 = vsyncpa [#allocation9], 0
    // Predicated region
    $region2: #{tpu_custom_call.1} parent=1 // pred_check
      _
    $region3: #{tpu_custom_call.1} parent=1 // pred_check_branch
      %14 = sbr.rel (0) target = $region5
    $region4: #{tpu_custom_call.1} parent=1 // pred_region
      %s16 = ssub.s32 256, 256
      %17 = vsyncadd [#allocation3], %s16
      %s18 = sshll.u32 [#allocation2], 4
      %s19 = int_to_ptr.vmem [resolvable:$true] %s18
      %24 = dma.hbm_to_vmem [thread:$0]  %s0, 256, %s19, [#allocation3], 128, 128, 8
    $region5: #{tpu_custom_call.1} parent=1 // pred_fallthru
      _
    // Predicated region
    $region6: #{tpu_custom_call.1} parent=1 // pred_check
      _
    $region7: #{tpu_custom_call.1} parent=1 // pred_check_branch
      %26 = sbr.rel (0) target = $region9
    $region8: #{tpu_custom_call.1} parent=1 // pred_region
      %s28 = ssub.s32 2048, 2048
      %29 = vsyncadd [#allocation6], %s28
      %s30 = sshll.u32 [#allocation5], 4
      %s31 = int_to_ptr.vmem [resolvable:$true] %s30
      %36 = dma.hbm_to_vmem [thread:$0]  %s1, 2048, %s31, [#allocation6], 128, 128, 8
    $region9: #{tpu_custom_call.1} parent=1 // pred_fallthru
      _
    // Predicated region
    $region10: #{tpu_custom_call.1} parent=1 // pred_check
      _
    $region11: #{tpu_custom_call.1} parent=1 // pred_check_branch
      %38 = sbr.rel (0) target = $region13
    $region12: #{tpu_custom_call.1} parent=1 // pred_region
      %39 = dma.done [#allocation3], 256
    $region13: #{tpu_custom_call.1} parent=1 // pred_fallthru
      _
    // Predicated region
    $region14: #{tpu_custom_call.1} parent=1 // pred_check
      _
    $region15: #{tpu_custom_call.1} parent=1 // pred_check_branch
      %41 = sbr.rel (0) target = $region17
    $region16: #{tpu_custom_call.1} parent=1 // pred_region
      %42 = dma.done [#allocation6], 2048
    $region17: #{tpu_custom_call.1} parent=1 // pred_fallthru
      _
    %v43 = vld [vmem:[#allocation2] sm:$0xff]
    %v44 = vld [vmem:[#allocation2 + $0x8] sm:$0xff]
    %v45 = vld [vmem:[#allocation5] sm:$0xff]
    %v46 = vld [vmem:[#allocation5 + $0x8] sm:$0xff]
    %v47 = vld [vmem:[#allocation5 + $0x10] sm:$0xff]
    %v48 = vld [vmem:[#allocation5 + $0x18] sm:$0xff]
    %v49 = vld [vmem:[#allocation5 + $0x20] sm:$0xff]
    %v50 = vld [vmem:[#allocation5 + $0x28] sm:$0xff]
    %v51 = vld [vmem:[#allocation5 + $0x30] sm:$0xff]
    %v52 = vld [vmem:[#allocation5 + $0x38] sm:$0xff]
    %v53 = vld [vmem:[#allocation5 + $0x40] sm:$0xff]
    %v54 = vld [vmem:[#allocation5 + $0x48] sm:$0xff]
    %v55 = vld [vmem:[#allocation5 + $0x50] sm:$0xff]
    %v56 = vld [vmem:[#allocation5 + $0x58] sm:$0xff]
    %v57 = vld [vmem:[#allocation5 + $0x60] sm:$0xff]
    %v58 = vld [vmem:[#allocation5 + $0x68] sm:$0xff]
    %v59 = vld [vmem:[#allocation5 + $0x70] sm:$0xff]
    %v60 = vld [vmem:[#allocation5 + $0x78] sm:$0xff]
    %61 = vmatprep.subr.mxu0 0.0
    %62 = vmatpush1.xpose.msra.mxu0 %v60
    %63 = vmatprep.subr.mxu0 0.0
    %64 = vmatpush1.xpose.msra.mxu0 %v59
    %65 = vmatprep.subr.mxu0 0.0
    %66 = vmatpush1.xpose.msra.mxu0 %v58
    %67 = vmatprep.subr.mxu0 0.0
    %68 = vmatpush1.xpose.msra.mxu0 %v57
    %69 = vmatprep.subr.mxu0 0.0
    %70 = vmatpush1.xpose.msra.mxu0 %v56
    %71 = vmatprep.subr.mxu0 0.0
    %72 = vmatpush1.xpose.msra.mxu0 %v55
    %73 = vmatprep.subr.mxu0 0.0
    %74 = vmatpush1.xpose.msra.mxu0 %v54
    %75 = vmatprep.subr.mxu0 0.0
    %76 = vmatpush1.xpose.msra.mxu0 %v53
    %77 = vmatprep.subr.mxu0 0.0
    %78 = vmatpush1.xpose.msra.mxu0 %v52
    %79 = vmatprep.subr.mxu0 0.0
    %80 = vmatpush1.xpose.msra.mxu0 %v51
    %81 = vmatprep.subr.mxu0 0.0
    %82 = vmatpush1.xpose.msra.mxu0 %v50
    %83 = vmatprep.subr.mxu0 0.0
    %84 = vmatpush1.xpose.msra.mxu0 %v49
    %85 = vmatprep.subr.mxu0 0.0
    %86 = vmatpush1.xpose.msra.mxu0 %v48
    %87 = vmatprep.subr.mxu0 0.0
    %88 = vmatpush1.xpose.msra.mxu0 %v47
    %89 = vmatprep.subr.mxu0 0.0
    %90 = vmatpush1.xpose.msra.mxu0 %v46
    %91 = vmatprep.subr.mxu0 0.0
    %92 = vmatpush1.xpose.msra.mxu0 %v45
    %93 = vmatprep.subr.mxu0 0.0
    %94 = vmatpush2.xpose.msra.mxu0 0.0
    %95 = vmatprep.subr.mxu0 0.0
    %96 = vmatpush2.xpose.msra.mxu0 0.0
    %97 = vmatprep.subr.mxu0 0.0
    %98 = vmatpush2.xpose.msra.mxu0 0.0
    %99 = vmatprep.subr.mxu0 0.0
    %100 = vmatpush2.xpose.msra.mxu0 0.0
    %101 = vmatprep.subr.mxu0 0.0
    %102 = vmatpush2.xpose.msra.mxu0 0.0
    %103 = vmatprep.subr.mxu0 0.0
    %104 = vmatpush2.xpose.msra.mxu0 0.0
    %105 = vmatprep.subr.mxu0 0.0
    %106 = vmatpush2.xpose.msra.mxu0 0.0
    %107 = vmatprep.subr.mxu0 0.0
    %108 = vmatpush2.xpose.msra.mxu0 0.0
    %109 = vmatprep.subr.mxu0 0.0
    %110 = vmatpush2.xpose.msra.mxu0 0.0
    %111 = vmatprep.subr.mxu0 0.0
    %112 = vmatpush2.xpose.msra.mxu0 0.0
    %113 = vmatprep.subr.mxu0 0.0
    %114 = vmatpush2.xpose.msra.mxu0 0.0
    %115 = vmatprep.subr.mxu0 0.0
    %116 = vmatpush2.xpose.msra.mxu0 0.0
    %117 = vmatprep.subr.mxu0 0.0
    %118 = vmatpush2.xpose.msra.mxu0 0.0
    %119 = vmatprep.subr.mxu0 0.0
    %120 = vmatpush2.xpose.msra.mxu0 0.0
    %121 = vmatprep.subr.mxu0 0.0
    %122 = vmatpush2.xpose.msra.mxu0 0.0
    %123 = vmatprep.subr.mxu0 0.0
    %124 = vmatpush2.xpose.msra.mxu0 0.0
    %125 = vmatprep.mubr.f32.mxu0 0.0
    %126 = vmatmul.mubr.f32.gmra.mxu0 %v43
    %v127 = vpop.f32.mrf.mxu0
    %v128 = vadd.f32 0.0, %v127
    %v129 = vpop.f32.mrf.mxu0
    %130 = vmatprep.mubr.f32.mxu0 0.0
    %131 = vmatmul.mubr.f32.gmra.mxu0 %v44
    %v132 = vpop.f32.mrf.mxu0
    %v133 = vadd.f32 0.0, %v132
    %v134 = vpop.f32.mrf.mxu0
    %135 = vdwg.mxu0
    %136 = vst [vmem:[#allocation8] sm:$0xff] %v128
    %137 = vst [vmem:[#allocation8 + $0x8] sm:$0xff] %v133
    %138 = vmatprep.subr.mxu0 0.0
    %139 = vmatpush1.msra.mxu0 %v60
    %140 = vmatprep.subr.mxu0 0.0
    %141 = vmatpush1.msra.mxu0 %v59
    %142 = vmatprep.subr.mxu0 0.0
    %143 = vmatpush1.msra.mxu0 %v58
    %144 = vmatprep.subr.mxu0 0.0
    %145 = vmatpush1.msra.mxu0 %v57
    %146 = vmatprep.subr.mxu0 0.0
    %147 = vmatpush1.msra.mxu0 %v56
    %148 = vmatprep.subr.mxu0 0.0
    %149 = vmatpush1.msra.mxu0 %v55
    %150 = vmatprep.subr.mxu0 0.0
    %151 = vmatpush1.msra.mxu0 %v54
    %152 = vmatprep.subr.mxu0 0.0
    %153 = vmatpush1.msra.mxu0 %v53
    %154 = vmatprep.subr.mxu0 0.0
    %155 = vmatpush1.msra.mxu0 %v52
    %156 = vmatprep.subr.mxu0 0.0
    %157 = vmatpush1.msra.mxu0 %v51
    %158 = vmatprep.subr.mxu0 0.0
    %159 = vmatpush1.msra.mxu0 %v50
    %160 = vmatprep.subr.mxu0 0.0
    %161 = vmatpush1.msra.mxu0 %v49
    %162 = vmatprep.subr.mxu0 0.0
    %163 = vmatpush1.msra.mxu0 %v48
    %164 = vmatprep.subr.mxu0 0.0
    %165 = vmatpush1.msra.mxu0 %v47
    %166 = vmatprep.subr.mxu0 0.0
    %167 = vmatpush1.msra.mxu0 %v46
    %168 = vmatprep.subr.mxu0 0.0
    %169 = vmatpush1.msra.mxu0 %v45
    %170 = vmatprep.subr.mxu0 0.0
    %171 = vmatpush2.msra.mxu0 0.0
    %172 = vmatprep.subr.mxu0 0.0
    %173 = vmatpush2.msra.mxu0 0.0
    %174 = vmatprep.subr.mxu0 0.0
    %175 = vmatpush2.msra.mxu0 0.0
    %176 = vmatprep.subr.mxu0 0.0
    %177 = vmatpush2.msra.mxu0 0.0
    %178 = vmatprep.subr.mxu0 0.0
    %179 = vmatpush2.msra.mxu0 0.0
    %180 = vmatprep.subr.mxu0 0.0
    %181 = vmatpush2.msra.mxu0 0.0
    %182 = vmatprep.subr.mxu0 0.0
    %183 = vmatpush2.msra.mxu0 0.0
    %184 = vmatprep.subr.mxu0 0.0
    %185 = vmatpush2.msra.mxu0 0.0
    %186 = vmatprep.subr.mxu0 0.0
    %187 = vmatpush2.msra.mxu0 0.0
    %188 = vmatprep.subr.mxu0 0.0
    %189 = vmatpush2.msra.mxu0 0.0
    %190 = vmatprep.subr.mxu0 0.0
    %191 = vmatpush2.msra.mxu0 0.0
    %192 = vmatprep.subr.mxu0 0.0
    %193 = vmatpush2.msra.mxu0 0.0
    %194 = vmatprep.subr.mxu0 0.0
    %195 = vmatpush2.msra.mxu0 0.0
    %196 = vmatprep.subr.mxu0 0.0
    %197 = vmatpush2.msra.mxu0 0.0
    %198 = vmatprep.subr.mxu0 0.0
    %199 = vmatpush2.msra.mxu0 0.0
    %200 = vmatprep.subr.mxu0 0.0
    %201 = vmatpush2.msra.mxu0 0.0
    %202 = vmatprep.mubr.f32.mxu0 0.0
    %203 = vmatmul.mubr.f32.gmra.mxu0 %v128
    %v204 = vpop.f32.mrf.mxu0
    %v205 = vadd.f32 0.0, %v204
    %v206 = vpop.f32.mrf.mxu0
    %207 = vmatprep.mubr.f32.mxu0 0.0
    %208 = vmatmul.mubr.f32.gmra.mxu0 %v133
    %v209 = vpop.f32.mrf.mxu0
    %v210 = vadd.f32 0.0, %v209
    %v211 = vpop.f32.mrf.mxu0
    %212 = vdwg.mxu0
    %213 = vst [vmem:[#allocation7] sm:$0xff] %v205
    %214 = vst [vmem:[#allocation7 + $0x8] sm:$0xff] %v210
    // Predicated region
    $region18: #{tpu_custom_call.1} parent=1 // pred_check
      _
    $region19: #{tpu_custom_call.1} parent=1 // pred_check_branch
      %216 = sbr.rel (0) target = $region21
    $region20: #{tpu_custom_call.1} parent=1 // pred_region
      %s218 = ssub.s32 256, 256
      %219 = vsyncadd [#allocation4], %s218
      %s220 = sshll.u32 [#allocation7], 4
      %s221 = int_to_ptr.vmem [resolvable:$true] %s220
      %226 = dma.vmem_to_hbm [thread:$0]  %s221, 256, %s2, [#allocation4], 128, 128, 8
    $region21: #{tpu_custom_call.1} parent=1 // pred_fallthru
      _
    // Predicated region
    $region22: #{tpu_custom_call.1} parent=1 // pred_check
      _
    $region23: #{tpu_custom_call.1} parent=1 // pred_check_branch
      %228 = sbr.rel (0) target = $region25
    $region24: #{tpu_custom_call.1} parent=1 // pred_region
      %s230 = ssub.s32 256, 256
      %231 = vsyncadd [#allocation9], %s230
      %s232 = sshll.u32 [#allocation8], 4
      %s233 = int_to_ptr.vmem [resolvable:$true] %s232
      %238 = dma.vmem_to_hbm [thread:$0]  %s233, 256, %s3, [#allocation9], 128, 128, 8
    $region25: #{tpu_custom_call.1} parent=1 // pred_fallthru
      _
    // Predicated region
    $region26: #{tpu_custom_call.1} parent=1 // pred_check
      _
    $region27: #{tpu_custom_call.1} parent=1 // pred_check_branch
      %240 = sbr.rel (0) target = $region29
    $region28: #{tpu_custom_call.1} parent=1 // pred_region
      %241 = dma.done [#allocation4], 256
    $region29: #{tpu_custom_call.1} parent=1 // pred_fallthru
      _
    // Predicated region
    $region30: #{tpu_custom_call.1} parent=1 // pred_check
      _
    $region31: #{tpu_custom_call.1} parent=1 // pred_check_branch
      %243 = sbr.rel (0) target = $region33
    $region32: #{tpu_custom_call.1} parent=1 // pred_region
      %244 = dma.done [#allocation9], 256
    $region33: #{tpu_custom_call.1} parent=1 // pred_fallthru
      _
    %245 = vsyncpa [#allocation3], 1
    %246 = vsyncpa [#allocation6], 1
    %247 = vsyncpa [#allocation4], 1
    %248 = vsyncpa [#allocation9], 1

</llo_original>
